<compile_context>
chip_gen: v7x
topology: tpu7x:2x2x1
jax: 0.10.0
libtpu: 0.0.40
codegen_flags: <defaults>
</compile_context>

<pallas_src>
import jax
import jax.numpy as jnp
from jax.experimental import pallas as pl
from jax.experimental.pallas import tpu as pltpu


_LANE_CANDIDATES = (8192, 4096, 2048, 1024, 512, 256, 128)  # lane-dense widths


def _copy_kernel(x_ref, o_ref):
    # Streaming pass-through of one (tile_rows, lane_w) VMEM tile.
    o_ref[...] = x_ref[...]


def _dma_copy_kernel(x_hbm_ref, o_hbm_ref, sem):
    # Whole-array HBM -> HBM DMA (no VMEM staging, no vld/vst body).
    copy = pltpu.make_async_copy(x_hbm_ref, o_hbm_ref, sem)
    copy.start()
    copy.wait()


def _target_tile_bytes():
    """Generation-specific tile budget (v7x ~8 MiB, v6e 4 MiB, else 2 MiB)."""
    try:
        kind = jax.devices()[0].device_kind.lower()
    except Exception:
        kind = ""
    if "v7" in kind:
        return 8 << 20
    if "v6" in kind:
        return 4 << 20
    return 2 << 20  # v5e (16 MiB default scoped VMEM) and older: stay at 2 MiB


def _plan_tiling(total, itemsize, tile_bytes):
    """Pick (lane_w, tile_rows) for a lane-dense (rows, lane_w) view.

    Caller guarantees total % 128 == 0, so some candidate always divides and
    no padding is ever needed.
    """
    lane_w = 128
    for w in _LANE_CANDIDATES:
        if total % w == 0:
            lane_w = w
            break

    rows = total // lane_w
    pack = max(1, 32 // max(1, itemsize))  # packed sublanes: f32->8, bf16->16, i8->32

    if rows <= pack:
        # Single block covering the full row extent (always a legal block shape).
        return lane_w, rows

    # Rows per tile bounded by the VMEM tile budget, rounded to the packed
    # sublane multiple so the block satisfies the (8,128) layout rule.
    by_bytes = max(pack, (tile_bytes // (lane_w * itemsize)) // pack * pack)
    # Keep the grid ~>=4 long for multi-tile arrays so the "parallel" axis can
    # be sharded across both TensorCores on v7x.
    by_grid = max(pack, ((pl.cdiv(rows, 4) + pack - 1) // pack) * pack)
    tile_rows = min(by_bytes, by_grid)
    return lane_w, tile_rows


def my_model_forward(x, num_classes=None):
    """Pallas implementation of MyModel.forward (identity).

    `num_classes` is accepted for signature parity with the PyTorch module but
    (as in the reference) is unused by the forward pass.
    """
    del num_classes
    orig_shape = x.shape
    total = x.size
    if total == 0:
        return x

    itemsize = jnp.dtype(x.dtype).itemsize
    cost = pl.CostEstimate(
        flops=0, transcendentals=0, bytes_accessed=2 * total * itemsize
    )

    if total % 128 != 0:
        # Irregular sizes: one direct HBM->HBM DMA of the whole array.
        return pl.pallas_call(
            _dma_copy_kernel,
            out_shape=jax.ShapeDtypeStruct(orig_shape, x.dtype),
            in_specs=[pl.BlockSpec(memory_space=pl.ANY)],
            out_specs=pl.BlockSpec(memory_space=pl.ANY),
            scratch_shapes=[pltpu.SemaphoreType.DMA(())],
            cost_estimate=cost,
        )(x)

    tile_bytes = _target_tile_bytes()
    lane_w, tile_rows = _plan_tiling(total, itemsize, tile_bytes)
    rows = total // lane_w
    grid = (pl.cdiv(rows, tile_rows),)  # boundary block may be partial; Pallas masks it

    x2d = x.reshape(rows, lane_w)  # lane-dense view, no padding

    # in + out, double-buffered, plus headroom; <= 36 MiB even on v7x (64 MiB VMEM).
    block_bytes = tile_rows * lane_w * itemsize
    vmem_limit = min(64 << 20, 4 * block_bytes + (4 << 20))

    out2d = pl.pallas_call(
        _copy_kernel,
        out_shape=jax.ShapeDtypeStruct((rows, lane_w), x.dtype),
        grid_spec=pltpu.PrefetchScalarGridSpec(
            num_scalar_prefetch=0,
            grid=grid,
            in_specs=[pl.BlockSpec((tile_rows, lane_w), lambda i: (i, 0))],
            out_specs=pl.BlockSpec((tile_rows, lane_w), lambda i: (i, 0)),
        ),
        compiler_params=pltpu.CompilerParams(
            dimension_semantics=("parallel",),
            vmem_limit_bytes=vmem_limit,
        ),
        cost_estimate=cost,
    )(x2d)

    return out2d.reshape(orig_shape)


if __name__ == "__main__":
    key = jax.random.PRNGKey(0)
    # Small NCHW input consistent with a conv-style module: batch=2, C=4, 16x16.
    x = jax.random.normal(key, (2, 4, 16, 16), dtype=jnp.float32)

    num_classes = 10  # accepted by __init__ in the reference; unused in forward
    y = my_model_forward(x, num_classes=num_classes)
    y = jax.block_until_ready(y)

    assert y.shape == x.shape and y.dtype == x.dtype
    assert bool(jnp.all(y == x))
    print("KERNEL_OK")
</pallas_src>

<mosaic_0001>
module attributes {stable_mosaic.version = 11 : i64} {
  func.func @_copy_kernel(%arg0: i32, %arg1: memref<1x2048xf32, #tpu.memory_space<vmem>>, %arg2: memref<1x2048xf32, #tpu.memory_space<vmem>>) attributes {dimension_semantics = [#tpu.dimension_semantics<parallel>], iteration_bounds = array<i64: 1>, scalar_prefetch = 0 : i64, scratch_operands = 0 : i64, tpu.core_type = #tpu.core_type<tc>, window_params = [{transform_indices = @transform_0, window_bounds = array<i64: 1, 2048>}, {transform_indices = @transform_1, window_bounds = array<i64: 1, 2048>}]} {
    %c0 = arith.constant 0 : index
    %c0_0 = arith.constant 0 : index
    %0 = vector.load %arg1[%c0, %c0_0] : memref<1x2048xf32, #tpu.memory_space<vmem>>, vector<1x2048xf32>
    %c0_1 = arith.constant 0 : index
    %c0_2 = arith.constant 0 : index
    %1 = vector.load %arg2[%c0_1, %c0_2] : memref<1x2048xf32, #tpu.memory_space<vmem>>, vector<1x2048xf32>
    tpu.vector_store %arg2[%c0_1, %c0_2], %0 {strides = array<i32>} : memref<1x2048xf32, #tpu.memory_space<vmem>>, vector<1x2048xf32>,
    return
  }
  func.func @transform_0(%arg0: i32) -> (i32, i32) {
    %c0_i32 = arith.constant 0 : i32
    %c0_i32_0 = arith.constant 0 : i32
    return %arg0, %c0_i32 : i32, i32
  }
  func.func @transform_1(%arg0: i32) -> (i32, i32) {
    %c0_i32 = arith.constant 0 : i32
    %c0_i32_0 = arith.constant 0 : i32
    return %arg0, %c0_i32 : i32, i32
  }
}

</mosaic_0001>

<llo_original>
// kernel: tpu_custom_call.1
$region0: #{tpu_custom_call.1}
  #allocation0 [shape = 'u32[]', space=smem, size = 0x4, offset = 0x4, fixed_abs, tag = 'smem constant byte address 0x4 - core index']
  #allocation1 [shape = 'u32[144,128]{1,0:T(1,128)}', space=vmem, size = 0x12000, scoped, tag = 'internal scratch']
  %s0 = inlined_call_operand.hbm [shape: f32[1,2048], index: 0, kind: input, shape index: {}]
  %s1 = inlined_call_operand.hbm [shape: f32[1,2048], index: 1, kind: output, shape index: {}]
  %s2 = sld [smem:[#allocation0]]
  $region18: #{tpu_custom_call.1} parent=0
    _
  %s4 = ssub.s32 1, %s2
  %s5 = scalar_select 0, %s4, %s2
  $region1: #{tpu_custom_call.1} parent=0
    #allocation2 [shape = 'u8[8192]{0}', space=vmem, size = 0x2000, scoped, tag = 'input window, operand 0, single buffered']
    #allocation3 [shape = 's32[1]{0}', space=sflag, size = 0x4, scoped, tag = 'scoped memory for tpu_custom_call.1']
    #allocation4 [shape = 's32[1]{0}', space=sflag, size = 0x4, scoped, tag = 'scoped memory for tpu_custom_call.1']
    #allocation5 [shape = 'u8[8192]{0}', space=vmem, size = 0x2000, scoped, tag = 'output window, operand 0, single buffered']
    %6 = vsyncpa [#allocation3], 0
    %7 = vsyncpa [#allocation4], 0
    // Predicated region
    $region2: #{tpu_custom_call.1} parent=1 // pred_check
      _
    $region3: #{tpu_custom_call.1} parent=1 // pred_check_branch
      %9 = sbr.rel (0) target = $region5
    $region4: #{tpu_custom_call.1} parent=1 // pred_region
      %s11 = ssub.s32 256, 256
      %12 = vsyncadd [#allocation3], %s11
      %s14 = sshll.u32 [#allocation2], 4
      %s15 = int_to_ptr.vmem [resolvable:$true] %s14
      %17 = dma.hbm_to_vmem [thread:$0]  %s0, 256, %s15, [#allocation3]
    $region5: #{tpu_custom_call.1} parent=1 // pred_fallthru
      _
    // Predicated region
    $region6: #{tpu_custom_call.1} parent=1 // pred_check
      _
    $region7: #{tpu_custom_call.1} parent=1 // pred_check_branch
      %19 = sbr.rel (0) target = $region9
    $region8: #{tpu_custom_call.1} parent=1 // pred_region
      %20 = dma.done [#allocation3], 256
    $region9: #{tpu_custom_call.1} parent=1 // pred_fallthru
      _
    %v21 = vld [vmem:[#allocation2] sm:$0xff]
    %v22 = vld [vmem:[#allocation2 + $0x8] sm:$0xff]
    %23 = vst [vmem:[#allocation5] sm:$0xff] %v21
    %24 = vst [vmem:[#allocation5 + $0x8] sm:$0xff] %v22
    // Predicated region
    $region10: #{tpu_custom_call.1} parent=1 // pred_check
      _
    $region11: #{tpu_custom_call.1} parent=1 // pred_check_branch
      %26 = sbr.rel (0) target = $region13
    $region12: #{tpu_custom_call.1} parent=1 // pred_region
      %s28 = ssub.s32 256, 256
      %29 = vsyncadd [#allocation4], %s28
      %s31 = sshll.u32 [#allocation5], 4
      %s32 = int_to_ptr.vmem [resolvable:$true] %s31
      %34 = dma.vmem_to_hbm [thread:$0]  %s32, 256, %s1, [#allocation4]
    $region13: #{tpu_custom_call.1} parent=1 // pred_fallthru
      _
    // Predicated region
    $region14: #{tpu_custom_call.1} parent=1 // pred_check
      _
    $region15: #{tpu_custom_call.1} parent=1 // pred_check_branch
      %36 = sbr.rel (0) target = $region17
    $region16: #{tpu_custom_call.1} parent=1 // pred_region
      %37 = dma.done [#allocation4], 256
    $region17: #{tpu_custom_call.1} parent=1 // pred_fallthru
      _
    %38 = vsyncpa [#allocation3], 1
    %39 = vsyncpa [#allocation4], 1

</llo_original>
